<compile_context>
chip_gen: v7x
topology: tpu7x:2x2x1
jax: 0.10.0
libtpu: 0.0.40
codegen_flags: <defaults>
</compile_context>

<pallas_src>
import jax
import jax.numpy as jnp
from jax.experimental import pallas as pl
from jax.experimental.pallas import tpu as pltpu

BN_EPS = 1e-5


def _vmem():
    # Small full-array blocks resident in VMEM (no grid tiling needed at these sizes).
    return pl.BlockSpec(memory_space=pltpu.MemorySpace.VMEM)


# ----------------------------------------------------------------------------
# Fused kernel: WeightAndSum readout + 3x (Linear->ReLU->foldedBN) + predict
# ----------------------------------------------------------------------------
def fused_gnn_kernel(feats_ref, smask_ref, seg_ref, aw_wt_ref,
                     w1_ref, w2_ref, w3_ref, vecs_ref, scal_ref,
                     out_ref, weight_ref):
    h = feats_ref[...]                                   # (N, F)
    aw_b = scal_ref[0:1, 0:1]                            # (1, 1) atom-weighting bias
    bp = scal_ref[0:1, 1:2]                              # (1, 1) folded predict bias

    # ---- WeightAndSum readout --------------------------------------------
    # Atom-weighting logit: (N,F)*(1,F) broadcast mul (VPU) + lane reduce (XLU)
    # instead of a width-1 MXU matmul.
    logits = jnp.sum(h * aw_wt_ref[...], axis=-1, keepdims=True) + aw_b   # (N, 1)
    w = jax.nn.sigmoid(logits) * smask_ref[...]                           # (N, 1)
    weight_ref[...] = w
    # Per-graph weighted sum of node feats: (B,N) @ (N,F) -> (B,F)   (MXU)
    g = jnp.dot(seg_ref[...], h * w, preferred_element_type=jnp.float32)

    # ---- MLP head (Dropout = identity; BN folded into W2/W3/Wp in wrapper) -
    t = jnp.maximum(
        jnp.dot(g, w1_ref[...], preferred_element_type=jnp.float32)
        + vecs_ref[0:1, :], 0.0)
    t = jnp.maximum(
        jnp.dot(t, w2_ref[...], preferred_element_type=jnp.float32)
        + vecs_ref[1:2, :], 0.0)
    t = jnp.maximum(
        jnp.dot(t, w3_ref[...], preferred_element_type=jnp.float32)
        + vecs_ref[2:3, :], 0.0)
    # Prediction head: (B,H)*(1,H) mul + lane reduce instead of (H,1) MXU matmul.
    out_ref[...] = jnp.sum(t * vecs_ref[3:4, :], axis=-1, keepdims=True) + bp


# ----------------------------------------------------------------------------
# Full BaseGNN forward (wrapper folds BN + packs params, then one pallas_call)
# ----------------------------------------------------------------------------
@jax.jit
def base_gnn_forward(seg, node_feats, smask_feats, params):
    # rgcn_gnn_layers is empty in BaseGNN -> node feats pass through unchanged.
    N, F = node_feats.shape
    B = seg.shape[0]

    def bn_scale_shift(p):
        scale = p["gamma"] * jax.lax.rsqrt(p["rvar"] + BN_EPS)
        shift = p["beta"] - p["rmean"] * scale
        return scale, shift

    s1, sh1 = bn_scale_shift(params["fc1"])
    s2, sh2 = bn_scale_shift(params["fc2"])
    s3, sh3 = bn_scale_shift(params["fc3"])

    W1, b1 = params["fc1"]["W"], params["fc1"]["b"]
    # Fold BN_i (eval-mode affine) into the NEXT layer's Linear.
    W2f = s1[:, None] * params["fc2"]["W"]
    b2f = params["fc2"]["b"] + sh1 @ params["fc2"]["W"]
    W3f = s2[:, None] * params["fc3"]["W"]
    b3f = params["fc3"]["b"] + sh2 @ params["fc3"]["W"]
    Wpf = s3[:, None] * params["predict"]["W"]                     # (H, 1)
    bpf = params["predict"]["b"] + sh3 @ params["predict"]["W"]    # (1,)

    vecs = jnp.stack([b1, b2f, b3f, Wpf[:, 0]], axis=0)            # (4, H)
    aw_wT = params["atom_weighting"]["W"].T                        # (1, F)
    scal = jnp.concatenate(
        [params["atom_weighting"]["b"], bpf]).reshape(1, 2).astype(jnp.float32)

    out, weight = pl.pallas_call(
        fused_gnn_kernel,
        out_shape=(
            jax.ShapeDtypeStruct((B, 1), jnp.float32),   # prediction
            jax.ShapeDtypeStruct((N, 1), jnp.float32),   # atom weights
        ),
        in_specs=[_vmem()] * 9,
        out_specs=(_vmem(), _vmem()),
    )(node_feats, smask_feats, seg, aw_wT, W1, W2f, W3f, vecs, scal)
    return out, weight


# ----------------------------------------------------------------------------
# Deterministic parameter init (shapes implied by BaseGNN.__init__)
# ----------------------------------------------------------------------------
def init_params(key, gnn_out_feats, ffn_hidden_feats):
    ks = iter(jax.random.split(key, 32))

    def linear(in_f, out_f):
        bound = 1.0 / jnp.sqrt(in_f)
        W = jax.random.uniform(next(ks), (in_f, out_f), jnp.float32, -bound, bound)
        b = jax.random.uniform(next(ks), (out_f,), jnp.float32, -bound, bound)
        return W, b

    def fc_block(in_f, out_f):
        W, b = linear(in_f, out_f)
        return dict(
            W=W, b=b,
            gamma=jax.random.uniform(next(ks), (out_f,), jnp.float32, 0.5, 1.5),
            beta=jax.random.uniform(next(ks), (out_f,), jnp.float32, -0.1, 0.1),
            rmean=jax.random.uniform(next(ks), (out_f,), jnp.float32, -0.1, 0.1),
            rvar=jax.random.uniform(next(ks), (out_f,), jnp.float32, 0.5, 1.5),
        )

    aw_W, aw_b = linear(gnn_out_feats, 1)
    pW, pb = linear(ffn_hidden_feats, 1)
    return dict(
        atom_weighting=dict(W=aw_W, b=aw_b),
        fc1=fc_block(gnn_out_feats, ffn_hidden_feats),
        fc2=fc_block(ffn_hidden_feats, ffn_hidden_feats),
        fc3=fc_block(ffn_hidden_feats, ffn_hidden_feats),
        predict=dict(W=pW, b=pb),
    )


# ----------------------------------------------------------------------------
# Pure-JAX reference (un-folded math, mirrors the PyTorch module exactly)
# ----------------------------------------------------------------------------
def reference_forward(seg, feats, smask, params):
    w = jax.nn.sigmoid(feats @ params["atom_weighting"]["W"]
                       + params["atom_weighting"]["b"]) * smask
    g = seg @ (feats * w)

    def fc(x, p):
        h = jnp.maximum(x @ p["W"] + p["b"], 0.0)
        return (h - p["rmean"]) / jnp.sqrt(p["rvar"] + BN_EPS) * p["gamma"] + p["beta"]

    h = fc(g, params["fc1"])
    h = fc(h, params["fc2"])
    h = fc(h, params["fc3"])
    out = h @ params["predict"]["W"] + params["predict"]["b"]
    return out, w


if __name__ == "__main__":
    # Small shapes consistent with the module: N total atoms across B molecules.
    B = 2                 # batch of molecules
    N = 16                # total atoms in the batch
    GNN_OUT_FEATS = 64    # gnn_rgcn_out_feats
    FFN_HIDDEN = 32       # ffn_hidden_feats

    key = jax.random.PRNGKey(0)
    k_feat, k_mask, k_param = jax.random.split(key, 3)

    node_feats = jax.random.normal(k_feat, (N, GNN_OUT_FEATS), jnp.float32)
    smask_feats = (jax.random.uniform(k_mask, (N, 1)) > 0.3).astype(jnp.float32)

    # graph membership: first 9 atoms -> molecule 0, remaining 7 -> molecule 1
    node_graph_id = jnp.array([0] * 9 + [1] * 7, dtype=jnp.int32)
    seg = jax.nn.one_hot(node_graph_id, B, dtype=jnp.float32).T  # (B, N)

    params = init_params(k_param, GNN_OUT_FEATS, FFN_HIDDEN)

    out, weight = base_gnn_forward(seg, node_feats, smask_feats, params)
    out = jax.block_until_ready(out)
    weight = jax.block_until_ready(weight)

    ref_out, ref_w = reference_forward(seg, node_feats, smask_feats, params)
    assert out.shape == (B, 1) and weight.shape == (N, 1)
    assert jnp.allclose(out, ref_out, atol=1e-4, rtol=1e-4)
    assert jnp.allclose(weight, ref_w, atol=1e-4, rtol=1e-4)

    print("KERNEL_OK")
</pallas_src>

<mosaic_0001>
module attributes {stable_mosaic.version = 11 : i64} {
  func.func @fused_gnn_kernel(%arg0: memref<16x64xf32, #tpu.memory_space<vmem>>, %arg1: memref<16x1xf32, #tpu.memory_space<vmem>>, %arg2: memref<2x16xf32, #tpu.memory_space<vmem>>, %arg3: memref<1x64xf32, #tpu.memory_space<vmem>>, %arg4: memref<64x32xf32, #tpu.memory_space<vmem>>, %arg5: memref<32x32xf32, #tpu.memory_space<vmem>>, %arg6: memref<32x32xf32, #tpu.memory_space<vmem>>, %arg7: memref<4x32xf32, #tpu.memory_space<vmem>>, %arg8: memref<1x2xf32, #tpu.memory_space<vmem>>, %arg9: memref<2x1xf32, #tpu.memory_space<vmem>>, %arg10: memref<16x1xf32, #tpu.memory_space<vmem>>) attributes {dimension_semantics = [], scalar_prefetch = 0 : i64, scratch_operands = 0 : i64, tpu.core_type = #tpu.core_type<tc>} {
    %c0 = arith.constant 0 : index
    %c0_0 = arith.constant 0 : index
    %0 = vector.load %arg0[%c0, %c0_0] : memref<16x64xf32, #tpu.memory_space<vmem>>, vector<16x64xf32>
    %c0_1 = arith.constant 0 : index
    %c0_2 = arith.constant 0 : index
    %1 = vector.load %arg8[%c0_1, %c0_2] : memref<1x2xf32, #tpu.memory_space<vmem>>, vector<1x1xf32>
    %c0_3 = arith.constant 0 : index
    %c1 = arith.constant 1 : index
    %2 = vector.load %arg8[%c0_3, %c1] : memref<1x2xf32, #tpu.memory_space<vmem>>, vector<1x1xf32>
    %c0_4 = arith.constant 0 : index
    %c0_5 = arith.constant 0 : index
    %3 = vector.load %arg3[%c0_4, %c0_5] : memref<1x64xf32, #tpu.memory_space<vmem>>, vector<1x64xf32>
    %4 = vector.broadcast %3 : vector<1x64xf32> to vector<16x64xf32>
    %5 = arith.mulf %0, %4 : vector<16x64xf32>
    %cst = arith.constant dense<0.000000e+00> : vector<16xf32>
    %6 = vector.multi_reduction <add>, %5, %cst [1] : vector<16x64xf32> to vector<16xf32>
    %7 = vector.shape_cast %6 : vector<16xf32> to vector<16x1xf32>
    %8 = vector.broadcast %1 : vector<1x1xf32> to vector<16x1xf32>
    %9 = arith.addf %7, %8 : vector<16x1xf32>
    %10 = arith.negf %9 : vector<16x1xf32>
    %11 = math.exp %10 : vector<16x1xf32>
    %cst_6 = arith.constant 1.000000e+00 : f32
    %12 = vector.broadcast %cst_6 : f32 to vector<16x1xf32>
    %13 = arith.addf %12, %11 : vector<16x1xf32>
    %14 = arith.divf %12, %13 : vector<16x1xf32>
    %c0_7 = arith.constant 0 : index
    %c0_8 = arith.constant 0 : index
    %15 = vector.load %arg1[%c0_7, %c0_8] : memref<16x1xf32, #tpu.memory_space<vmem>>, vector<16x1xf32>
    %16 = arith.mulf %14, %15 : vector<16x1xf32>
    %c0_9 = arith.constant 0 : index
    %c0_10 = arith.constant 0 : index
    %17 = vector.load %arg10[%c0_9, %c0_10] : memref<16x1xf32, #tpu.memory_space<vmem>>, vector<16x1xf32>
    tpu.vector_store %arg10[%c0_9, %c0_10], %16 {strides = array<i32>} : memref<16x1xf32, #tpu.memory_space<vmem>>, vector<16x1xf32>,
    %c0_11 = arith.constant 0 : index
    %c0_12 = arith.constant 0 : index
    %18 = vector.load %arg2[%c0_11, %c0_12] : memref<2x16xf32, #tpu.memory_space<vmem>>, vector<2x16xf32>
    %19 = vector.broadcast %16 : vector<16x1xf32> to vector<16x64xf32>
    %20 = arith.mulf %0, %19 : vector<16x64xf32>
    %cst_13 = arith.constant dense<0.000000e+00> : vector<2x64xf32>
    %21 = tpu.matmul %18, %20, %cst_13 {dimension_numbers = #tpu.dot_dimension_numbers<[1], [0], [0], [1], [0, 0, 1, 1], [], []>} : vector<2x16xf32>, vector<16x64xf32>, vector<2x64xf32> -> vector<2x64xf32>
    %c0_14 = arith.constant 0 : index
    %c0_15 = arith.constant 0 : index
    %22 = vector.load %arg4[%c0_14, %c0_15] : memref<64x32xf32, #tpu.memory_space<vmem>>, vector<64x32xf32>
    %cst_16 = arith.constant dense<0.000000e+00> : vector<2x32xf32>
    %23 = tpu.matmul %21, %22, %cst_16 {dimension_numbers = #tpu.dot_dimension_numbers<[1], [0], [0], [1], [0, 0, 1, 1], [], []>} : vector<2x64xf32>, vector<64x32xf32>, vector<2x32xf32> -> vector<2x32xf32>
    %c0_17 = arith.constant 0 : index
    %c0_18 = arith.constant 0 : index
    %24 = vector.load %arg7[%c0_17, %c0_18] : memref<4x32xf32, #tpu.memory_space<vmem>>, vector<1x32xf32>
    %25 = vector.broadcast %24 : vector<1x32xf32> to vector<2x32xf32>
    %26 = arith.addf %23, %25 : vector<2x32xf32>
    %cst_19 = arith.constant 0.000000e+00 : f32
    %27 = vector.broadcast %cst_19 : f32 to vector<2x32xf32>
    %28 = arith.maximumf %26, %27 : vector<2x32xf32>
    %c0_20 = arith.constant 0 : index
    %c0_21 = arith.constant 0 : index
    %29 = vector.load %arg5[%c0_20, %c0_21] : memref<32x32xf32, #tpu.memory_space<vmem>>, vector<32x32xf32>
    %cst_22 = arith.constant dense<0.000000e+00> : vector<2x32xf32>
    %30 = tpu.matmul %28, %29, %cst_22 {dimension_numbers = #tpu.dot_dimension_numbers<[1], [0], [0], [1], [0, 0, 1, 1], [], []>} : vector<2x32xf32>, vector<32x32xf32>, vector<2x32xf32> -> vector<2x32xf32>
    %c1_23 = arith.constant 1 : index
    %c0_24 = arith.constant 0 : index
    %31 = vector.load %arg7[%c1_23, %c0_24] : memref<4x32xf32, #tpu.memory_space<vmem>>, vector<1x32xf32>
    %32 = vector.broadcast %31 : vector<1x32xf32> to vector<2x32xf32>
    %33 = arith.addf %30, %32 : vector<2x32xf32>
    %cst_25 = arith.constant 0.000000e+00 : f32
    %34 = vector.broadcast %cst_25 : f32 to vector<2x32xf32>
    %35 = arith.maximumf %33, %34 : vector<2x32xf32>
    %c0_26 = arith.constant 0 : index
    %c0_27 = arith.constant 0 : index
    %36 = vector.load %arg6[%c0_26, %c0_27] : memref<32x32xf32, #tpu.memory_space<vmem>>, vector<32x32xf32>
    %cst_28 = arith.constant dense<0.000000e+00> : vector<2x32xf32>
    %37 = tpu.matmul %35, %36, %cst_28 {dimension_numbers = #tpu.dot_dimension_numbers<[1], [0], [0], [1], [0, 0, 1, 1], [], []>} : vector<2x32xf32>, vector<32x32xf32>, vector<2x32xf32> -> vector<2x32xf32>
    %c2 = arith.constant 2 : index
    %c0_29 = arith.constant 0 : index
    %38 = vector.load %arg7[%c2, %c0_29] : memref<4x32xf32, #tpu.memory_space<vmem>>, vector<1x32xf32>
    %39 = vector.broadcast %38 : vector<1x32xf32> to vector<2x32xf32>
    %40 = arith.addf %37, %39 : vector<2x32xf32>
    %cst_30 = arith.constant 0.000000e+00 : f32
    %41 = vector.broadcast %cst_30 : f32 to vector<2x32xf32>
    %42 = arith.maximumf %40, %41 : vector<2x32xf32>
    %c3 = arith.constant 3 : index
    %c0_31 = arith.constant 0 : index
    %43 = vector.load %arg7[%c3, %c0_31] : memref<4x32xf32, #tpu.memory_space<vmem>>, vector<1x32xf32>
    %44 = vector.broadcast %43 : vector<1x32xf32> to vector<2x32xf32>
    %45 = arith.mulf %42, %44 : vector<2x32xf32>
    %cst_32 = arith.constant dense<0.000000e+00> : vector<2xf32>
    %46 = vector.multi_reduction <add>, %45, %cst_32 [1] : vector<2x32xf32> to vector<2xf32>
    %47 = vector.shape_cast %46 : vector<2xf32> to vector<2x1xf32>
    %48 = vector.broadcast %2 : vector<1x1xf32> to vector<2x1xf32>
    %49 = arith.addf %47, %48 : vector<2x1xf32>
    %c0_33 = arith.constant 0 : index
    %c0_34 = arith.constant 0 : index
    %50 = vector.load %arg9[%c0_33, %c0_34] : memref<2x1xf32, #tpu.memory_space<vmem>>, vector<2x1xf32>
    tpu.vector_store %arg9[%c0_33, %c0_34], %49 {strides = array<i32>} : memref<2x1xf32, #tpu.memory_space<vmem>>, vector<2x1xf32>,
    return
  }
}

</mosaic_0001>

<llo_original>
// kernel: base_gnn_forward.1
$region0: #{base_gnn_forward.1}
  #allocation0 [shape = 'u32[]', space=smem, size = 0x4, offset = 0x4, fixed_abs, tag = 'smem constant byte address 0x4 - core index']
  #allocation1 [shape = 'u32[144,128]{1,0:T(1,128)}', space=vmem, size = 0x12000, scoped, tag = 'internal scratch']
  %s0 = inlined_call_operand.vmem [shape: f32[16,64], index: 0, kind: input, shape index: {}]
  %s1 = inlined_call_operand.vmem [shape: f32[16,1], index: 1, kind: input, shape index: {}]
  %s2 = inlined_call_operand.vmem [shape: f32[2,16], index: 2, kind: input, shape index: {}]
  %s3 = inlined_call_operand.vmem [shape: f32[1,64], index: 3, kind: input, shape index: {}]
  %s4 = inlined_call_operand.vmem [shape: f32[64,32], index: 4, kind: input, shape index: {}]
  %s5 = inlined_call_operand.vmem [shape: f32[32,32], index: 5, kind: input, shape index: {}]
  %s6 = inlined_call_operand.vmem [shape: f32[32,32], index: 6, kind: input, shape index: {}]
  %s7 = inlined_call_operand.vmem [shape: f32[4,32], index: 7, kind: input, shape index: {}]
  %s8 = inlined_call_operand.vmem [shape: f32[1,2], index: 8, kind: input, shape index: {}]
  %s9 = inlined_call_operand.vmem [shape: f32[2,1], index: 9, kind: output, shape index: {0}]
  %s10 = inlined_call_operand.vmem [shape: f32[16,1], index: 10, kind: output, shape index: {1}]
  %11 = xla_tuple %s9, %s10
  %s12 = sld [smem:[#allocation0]]
  $region54: #{base_gnn_forward.1} parent=0
    _
  %s14 = ssub.s32 1, %s12
  %s15 = scalar_select 0, %s14, %s12
  // Predicated region
  $region2: #{base_gnn_forward.1} parent=0 // pred_check
    _
  $region3: #{base_gnn_forward.1} parent=0 // pred_check_branch
    %17 = sbr.rel (0) target = $region5
  $region4: #{base_gnn_forward.1} parent=0 // pred_region
    _
  $region5: #{base_gnn_forward.1} parent=0 // pred_fallthru
    _
  // Predicated region
  $region6: #{base_gnn_forward.1} parent=0 // pred_check
    _
  $region7: #{base_gnn_forward.1} parent=0 // pred_check_branch
    %19 = sbr.rel (0) target = $region9
  $region8: #{base_gnn_forward.1} parent=0 // pred_region
    _
  $region9: #{base_gnn_forward.1} parent=0 // pred_fallthru
    _
  // Predicated region
  $region10: #{base_gnn_forward.1} parent=0 // pred_check
    _
  $region11: #{base_gnn_forward.1} parent=0 // pred_check_branch
    %21 = sbr.rel (0) target = $region13
  $region12: #{base_gnn_forward.1} parent=0 // pred_region
    _
  $region13: #{base_gnn_forward.1} parent=0 // pred_fallthru
    _
  // Predicated region
  $region14: #{base_gnn_forward.1} parent=0 // pred_check
    _
  $region15: #{base_gnn_forward.1} parent=0 // pred_check_branch
    %23 = sbr.rel (0) target = $region17
  $region16: #{base_gnn_forward.1} parent=0 // pred_region
    _
  $region17: #{base_gnn_forward.1} parent=0 // pred_fallthru
    _
  // Predicated region
  $region18: #{base_gnn_forward.1} parent=0 // pred_check
    _
  $region19: #{base_gnn_forward.1} parent=0 // pred_check_branch
    %25 = sbr.rel (0) target = $region21
  $region20: #{base_gnn_forward.1} parent=0 // pred_region
    _
  $region21: #{base_gnn_forward.1} parent=0 // pred_fallthru
    _
  // Predicated region
  $region22: #{base_gnn_forward.1} parent=0 // pred_check
    _
  $region23: #{base_gnn_forward.1} parent=0 // pred_check_branch
    %27 = sbr.rel (0) target = $region25
  $region24: #{base_gnn_forward.1} parent=0 // pred_region
    _
  $region25: #{base_gnn_forward.1} parent=0 // pred_fallthru
    _
  // Predicated region
  $region26: #{base_gnn_forward.1} parent=0 // pred_check
    _
  $region27: #{base_gnn_forward.1} parent=0 // pred_check_branch
    %29 = sbr.rel (0) target = $region29
  $region28: #{base_gnn_forward.1} parent=0 // pred_region
    _
  $region29: #{base_gnn_forward.1} parent=0 // pred_fallthru
    _
  // Predicated region
  $region30: #{base_gnn_forward.1} parent=0 // pred_check
    _
  $region31: #{base_gnn_forward.1} parent=0 // pred_check_branch
    %31 = sbr.rel (0) target = $region33
  $region32: #{base_gnn_forward.1} parent=0 // pred_region
    _
  $region33: #{base_gnn_forward.1} parent=0 // pred_fallthru
    _
  // Predicated region
  $region34: #{base_gnn_forward.1} parent=0 // pred_check
    _
  $region35: #{base_gnn_forward.1} parent=0 // pred_check_branch
    %33 = sbr.rel (0) target = $region37
  $region36: #{base_gnn_forward.1} parent=0 // pred_region
    _
  $region37: #{base_gnn_forward.1} parent=0 // pred_fallthru
    _
  %v34 = vld [vmem:[%s0] sm:$0xff]
  %v35 = vld [vmem:[%s0 + $0x8] sm:$0xff]
  %v36 = vld [vmem:[%s8] sm:$0x1]
  %v37 = vld [vmem:[%s3] sm:$0x1]
  %v39 = vlaneseq
  %v40 = vshrl.u32 %v39, 7
  %v41 = vsub.s32 0, %v40
  %v42 = vrot.slane %v37, %v41
  %v44 = vmul.f32 %v34, %v42
  %v45 = vmul.f32 %v35, %v42
  %vm46 = vcmask 523264
  %v47 = vsel %vm46, %v44, 0.0
  %48 = vadd.xlane.f32.xlu0 %v47
  %v49 = vpop.xlane.xlu0 %48
  %v50 = vsel %vm46, %v45, 0.0
  %51 = vadd.xlane.f32.xlu0 %v50
  %v52 = vpop.xlane.xlu0 %51
  %v54 = vlaneseq
  %v55 = vshrl.u32 %v54, 7
  %v56 = vsub.s32 0, %v55
  %v57 = vrot.slane %v36, %v56
  %v59 = vadd.f32 %v49, %v57
  %v60 = vadd.f32 %v52, %v57
  %v61 = vxor.u32 %v59, 2147483648
  %v62 = vxor.u32 %v60, 2147483648
  %v63 = vmul.f32 %v61, 1.442695
  %v64 = vpow.pop %v63
  %v65 = vmul.f32 %v62, 1.442695
  %v66 = vpow.pop %v65
  %v67 = vadd.f32 %v64, 1.0
  %v68 = vadd.f32 %v66, 1.0
  %v69 = vrcp.pop %v67
  %v70 = vmul.f32 1.0, %v69
  %v71 = vrcp.pop %v68
  %v72 = vmul.f32 1.0, %v71
  %v73 = vld [vmem:[%s1] sm:$0xff]
  %v74 = vld [vmem:[%s1 + $0x8] sm:$0xff]
  %v75 = vmul.f32 %v70, %v73
  %v76 = vmul.f32 %v72, %v74
  %vm77 = vcmask 7168
  %78 = vst.msk [vmem:[%s10] sm:$0xff] %vm77, %v75
  %79 = vst.msk [vmem:[%s10 + $0x8] sm:$0xff] %vm77, %v76
  %v80 = vld [vmem:[%s2] sm:$0x3]
  %82 = vset.pattern.permute.xlu0 0
  %83 = vperm.xlu0 %82, %v75
  %v84 = vpop.permute.xlu0 %83
  %87 = vset.pattern.permute.xlu0 0
  %88 = vperm.xlu0 %87, %v76
  %v89 = vpop.permute.xlu0 %88
  %v91 = vmul.f32 %v34, %v84
  %v92 = vmul.f32 %v35, %v89
  %vm93 = vcmask 130048
  %v95 = vsel %vm93, %v80, 0
  %97 = vmatprep.subr.mxu0 0.0
  %98 = vmatpush1.msra.mxu0 %v91
  %99 = vmatprep.subr.mxu0 0.0
  %100 = vmatpush1.msra.mxu0 %v92
  %101 = vmatprep.subr.mxu0 0.0
  %102 = vmatpush1.msra.mxu0 0.0
  %103 = vmatprep.subr.mxu0 0.0
  %104 = vmatpush1.msra.mxu0 0.0
  %105 = vmatprep.subr.mxu0 0.0
  %106 = vmatpush1.msra.mxu0 0.0
  %107 = vmatprep.subr.mxu0 0.0
  %108 = vmatpush1.msra.mxu0 0.0
  %109 = vmatprep.subr.mxu0 0.0
  %110 = vmatpush1.msra.mxu0 0.0
  %111 = vmatprep.subr.mxu0 0.0
  %112 = vmatpush1.msra.mxu0 0.0
  %113 = vmatprep.subr.mxu0 0.0
  %114 = vmatpush1.msra.mxu0 0.0
  %115 = vmatprep.subr.mxu0 0.0
  %116 = vmatpush1.msra.mxu0 0.0
  %117 = vmatprep.subr.mxu0 0.0
  %118 = vmatpush1.msra.mxu0 0.0
  %119 = vmatprep.subr.mxu0 0.0
  %120 = vmatpush1.msra.mxu0 0.0
  %121 = vmatprep.subr.mxu0 0.0
  %122 = vmatpush1.msra.mxu0 0.0
  %123 = vmatprep.subr.mxu0 0.0
  %124 = vmatpush1.msra.mxu0 0.0
  %125 = vmatprep.subr.mxu0 0.0
  %126 = vmatpush1.msra.mxu0 0.0
  %127 = vmatprep.subr.mxu0 0.0
  %128 = vmatpush1.msra.mxu0 0.0
  %129 = vmatprep.subr.mxu0 0.0
  %130 = vmatpush1.msra.mxu0 0.0
  %131 = vmatprep.subr.mxu0 0.0
  %132 = vmatpush1.msra.mxu0 0.0
  %133 = vmatprep.subr.mxu0 0.0
  %134 = vmatpush1.msra.mxu0 0.0
  %135 = vmatprep.subr.mxu0 0.0
  %136 = vmatpush1.msra.mxu0 0.0
  %137 = vmatprep.subr.mxu0 0.0
  %138 = vmatpush1.msra.mxu0 0.0
  %139 = vmatprep.subr.mxu0 0.0
  %140 = vmatpush1.msra.mxu0 0.0
  %141 = vmatprep.subr.mxu0 0.0
  %142 = vmatpush1.msra.mxu0 0.0
  %143 = vmatprep.subr.mxu0 0.0
  %144 = vmatpush1.msra.mxu0 0.0
  %145 = vmatprep.subr.mxu0 0.0
  %146 = vmatpush1.msra.mxu0 0.0
  %147 = vmatprep.subr.mxu0 0.0
  %148 = vmatpush1.msra.mxu0 0.0
  %149 = vmatprep.subr.mxu0 0.0
  %150 = vmatpush1.msra.mxu0 0.0
  %151 = vmatprep.subr.mxu0 0.0
  %152 = vmatpush1.msra.mxu0 0.0
  %153 = vmatprep.subr.mxu0 0.0
  %154 = vmatpush1.msra.mxu0 0.0
  %155 = vmatprep.subr.mxu0 0.0
  %156 = vmatpush1.msra.mxu0 0.0
  %157 = vmatprep.subr.mxu0 0.0
  %158 = vmatpush1.msra.mxu0 0.0
  %159 = vmatprep.subr.mxu0 0.0
  %160 = vmatpush1.msra.mxu0 0.0
  %161 = vmatprep.mubr.f32.mxu0 0.0
  %162 = vmatmul.mubr.f32.gmra.mrb[0].mxu0 %v95
  %v163 = vpop.f32.mrb[0].mxu0
  %v164 = vadd.f32 0.0, %v163
  %v165 = vpop.f32.mrb[0].mxu0
  %166 = vdwg.mxu0
  %v167 = vld [vmem:[%s4] sm:$0xff]
  %v168 = vld [vmem:[%s4 + $0x8] sm:$0xff]
  %v169 = vld [vmem:[%s4 + $0x10] sm:$0xff]
  %v170 = vld [vmem:[%s4 + $0x18] sm:$0xff]
  %v171 = vld [vmem:[%s4 + $0x20] sm:$0xff]
  %v172 = vld [vmem:[%s4 + $0x28] sm:$0xff]
  %v173 = vld [vmem:[%s4 + $0x30] sm:$0xff]
  %v174 = vld [vmem:[%s4 + $0x38] sm:$0xff]
  %v175 = vld [vmem:[%s7] sm:$0x1]
  %v176 = vlaneseq
  %v177 = vshrl.u32 %v176, 7
  %v178 = vsub.s32 0, %v177
  %v179 = vrot.slane %v175, %v178
  %v181 = vsel %vm46, %v164, 0
  %183 = vmatprep.subr.mxu0 0.0
  %184 = vmatpush1.msra.mxu0 %v167
  %185 = vmatprep.subr.mxu0 0.0
  %186 = vmatpush1.msra.mxu0 %v168
  %187 = vmatprep.subr.mxu0 0.0
  %188 = vmatpush1.msra.mxu0 %v169
  %189 = vmatprep.subr.mxu0 0.0
  %190 = vmatpush1.msra.mxu0 %v170
  %191 = vmatprep.subr.mxu0 0.0
  %192 = vmatpush1.msra.mxu0 %v171
  %193 = vmatprep.subr.mxu0 0.0
  %194 = vmatpush1.msra.mxu0 %v172
  %195 = vmatprep.subr.mxu0 0.0
  %196 = vmatpush1.msra.mxu0 %v173
  %197 = vmatprep.subr.mxu0 0.0
  %198 = vmatpush1.msra.mxu0 %v174
  %199 = vmatprep.subr.mxu0 0.0
  %200 = vmatpush1.msra.mxu0 0.0
  %201 = vmatprep.subr.mxu0 0.0
  %202 = vmatpush1.msra.mxu0 0.0
  %203 = vmatprep.subr.mxu0 0.0
  %204 = vmatpush1.msra.mxu0 0.0
  %205 = vmatprep.subr.mxu0 0.0
  %206 = vmatpush1.msra.mxu0 0.0
  %207 = vmatprep.subr.mxu0 0.0
  %208 = vmatpush1.msra.mxu0 0.0
  %209 = vmatprep.subr.mxu0 0.0
  %210 = vmatpush1.msra.mxu0 0.0
  %211 = vmatprep.subr.mxu0 0.0
  %212 = vmatpush1.msra.mxu0 0.0
  %213 = vmatprep.subr.mxu0 0.0
  %214 = vmatpush1.msra.mxu0 0.0
  %215 = vmatprep.subr.mxu0 0.0
  %216 = vmatpush1.msra.mxu0 0.0
  %217 = vmatprep.subr.mxu0 0.0
  %218 = vmatpush1.msra.mxu0 0.0
  %219 = vmatprep.subr.mxu0 0.0
  %220 = vmatpush1.msra.mxu0 0.0
  %221 = vmatprep.subr.mxu0 0.0
  %222 = vmatpush1.msra.mxu0 0.0
  %223 = vmatprep.subr.mxu0 0.0
  %224 = vmatpush1.msra.mxu0 0.0
  %225 = vmatprep.subr.mxu0 0.0
  %226 = vmatpush1.msra.mxu0 0.0
  %227 = vmatprep.subr.mxu0 0.0
  %228 = vmatpush1.msra.mxu0 0.0
  %229 = vmatprep.subr.mxu0 0.0
  %230 = vmatpush1.msra.mxu0 0.0
  %231 = vmatprep.subr.mxu0 0.0
  %232 = vmatpush1.msra.mxu0 0.0
  %233 = vmatprep.subr.mxu0 0.0
  %234 = vmatpush1.msra.mxu0 0.0
  %235 = vmatprep.subr.mxu0 0.0
  %236 = vmatpush1.msra.mxu0 0.0
  %237 = vmatprep.subr.mxu0 0.0
  %238 = vmatpush1.msra.mxu0 0.0
  %239 = vmatprep.subr.mxu0 0.0
  %240 = vmatpush1.msra.mxu0 0.0
  %241 = vmatprep.subr.mxu0 0.0
  %242 = vmatpush1.msra.mxu0 0.0
  %243 = vmatprep.subr.mxu0 0.0
  %244 = vmatpush1.msra.mxu0 0.0
  %245 = vmatprep.subr.mxu0 0.0
  %246 = vmatpush1.msra.mxu0 0.0
  %247 = vmatprep.mubr.f32.mxu0 0.0
  %248 = vmatmul.mubr.f32.gmra.mrb[0].mxu0 %v181
  %v249 = vpop.f32.mrb[0].mxu0
  %v250 = vadd.f32 %v179, %v249
  %v251 = vpop.f32.mrb[0].mxu0
  %252 = vdwg.mxu0
  %v253 = vmax.f32 %v250, 0.0
  %v254 = vld [vmem:[%s5] sm:$0xff]
  %v255 = vld [vmem:[%s5 + $0x8] sm:$0xff]
  %v256 = vld [vmem:[%s5 + $0x10] sm:$0xff]
  %v257 = vld [vmem:[%s5 + $0x18] sm:$0xff]
  %v258 = vld [vmem:[%s7 + $0x1] sm:$0x1]
  %v259 = vlaneseq
  %v260 = vshrl.u32 %v259, 7
  %v261 = vsub.s32 0, %v260
  %v262 = vrot.slane %v258, %v261
  %vm263 = vcmask 261120
  %v265 = vsel %vm263, %v253, 0
  %267 = vmatprep.subr.mxu0 0.0
  %268 = vmatpush1.msra.mxu0 %v254
  %269 = vmatprep.subr.mxu0 0.0
  %270 = vmatpush1.msra.mxu0 %v255
  %271 = vmatprep.subr.mxu0 0.0
  %272 = vmatpush1.msra.mxu0 %v256
  %273 = vmatprep.subr.mxu0 0.0
  %274 = vmatpush1.msra.mxu0 %v257
  %275 = vmatprep.subr.mxu0 0.0
  %276 = vmatpush1.msra.mxu0 0.0
  %277 = vmatprep.subr.mxu0 0.0
  %278 = vmatpush1.msra.mxu0 0.0
  %279 = vmatprep.subr.mxu0 0.0
  %280 = vmatpush1.msra.mxu0 0.0
  %281 = vmatprep.subr.mxu0 0.0
  %282 = vmatpush1.msra.mxu0 0.0
  %283 = vmatprep.subr.mxu0 0.0
  %284 = vmatpush1.msra.mxu0 0.0
  %285 = vmatprep.subr.mxu0 0.0
  %286 = vmatpush1.msra.mxu0 0.0
  %287 = vmatprep.subr.mxu0 0.0
  %288 = vmatpush1.msra.mxu0 0.0
  %289 = vmatprep.subr.mxu0 0.0
  %290 = vmatpush1.msra.mxu0 0.0
  %291 = vmatprep.subr.mxu0 0.0
  %292 = vmatpush1.msra.mxu0 0.0
  %293 = vmatprep.subr.mxu0 0.0
  %294 = vmatpush1.msra.mxu0 0.0
  %295 = vmatprep.subr.mxu0 0.0
  %296 = vmatpush1.msra.mxu0 0.0
  %297 = vmatprep.subr.mxu0 0.0
  %298 = vmatpush1.msra.mxu0 0.0
  %299 = vmatprep.subr.mxu0 0.0
  %300 = vmatpush1.msra.mxu0 0.0
  %301 = vmatprep.subr.mxu0 0.0
  %302 = vmatpush1.msra.mxu0 0.0
  %303 = vmatprep.subr.mxu0 0.0
  %304 = vmatpush1.msra.mxu0 0.0
  %305 = vmatprep.subr.mxu0 0.0
  %306 = vmatpush1.msra.mxu0 0.0
  %307 = vmatprep.subr.mxu0 0.0
  %308 = vmatpush1.msra.mxu0 0.0
  %309 = vmatprep.subr.mxu0 0.0
  %310 = vmatpush1.msra.mxu0 0.0
  %311 = vmatprep.subr.mxu0 0.0
  %312 = vmatpush1.msra.mxu0 0.0
  %313 = vmatprep.subr.mxu0 0.0
  %314 = vmatpush1.msra.mxu0 0.0
  %315 = vmatprep.subr.mxu0 0.0
  %316 = vmatpush1.msra.mxu0 0.0
  %317 = vmatprep.subr.mxu0 0.0
  %318 = vmatpush1.msra.mxu0 0.0
  %319 = vmatprep.subr.mxu0 0.0
  %320 = vmatpush1.msra.mxu0 0.0
  %321 = vmatprep.subr.mxu0 0.0
  %322 = vmatpush1.msra.mxu0 0.0
  %323 = vmatprep.subr.mxu0 0.0
  %324 = vmatpush1.msra.mxu0 0.0
  %325 = vmatprep.subr.mxu0 0.0
  %326 = vmatpush1.msra.mxu0 0.0
  %327 = vmatprep.subr.mxu0 0.0
  %328 = vmatpush1.msra.mxu0 0.0
  %329 = vmatprep.subr.mxu0 0.0
  %330 = vmatpush1.msra.mxu0 0.0
  %331 = vmatprep.mubr.f32.mxu0 0.0
  %332 = vmatmul.mubr.f32.gmra.mrb[0].mxu0 %v265
  %v333 = vpop.f32.mrb[0].mxu0
  %v334 = vadd.f32 %v262, %v333
  %v335 = vpop.f32.mrb[0].mxu0
  %336 = vdwg.mxu0
  %v337 = vmax.f32 %v334, 0.0
  %v338 = vld [vmem:[%s6] sm:$0xff]
  %v339 = vld [vmem:[%s6 + $0x8] sm:$0xff]
  %v340 = vld [vmem:[%s6 + $0x10] sm:$0xff]
  %v341 = vld [vmem:[%s6 + $0x18] sm:$0xff]
  %v342 = vld [vmem:[%s7 + $0x2] sm:$0x1]
  %v343 = vlaneseq
  %v344 = vshrl.u32 %v343, 7
  %v345 = vsub.s32 0, %v344
  %v346 = vrot.slane %v342, %v345
  %v348 = vsel %vm263, %v337, 0
  %350 = vmatprep.subr.mxu0 0.0
  %351 = vmatpush1.msra.mxu0 %v338
  %352 = vmatprep.subr.mxu0 0.0
  %353 = vmatpush1.msra.mxu0 %v339
  %354 = vmatprep.subr.mxu0 0.0
  %355 = vmatpush1.msra.mxu0 %v340
  %356 = vmatprep.subr.mxu0 0.0
  %357 = vmatpush1.msra.mxu0 %v341
  %358 = vmatprep.subr.mxu0 0.0
  %359 = vmatpush1.msra.mxu0 0.0
  %360 = vmatprep.subr.mxu0 0.0
  %361 = vmatpush1.msra.mxu0 0.0
  %362 = vmatprep.subr.mxu0 0.0
  %363 = vmatpush1.msra.mxu0 0.0
  %364 = vmatprep.subr.mxu0 0.0
  %365 = vmatpush1.msra.mxu0 0.0
  %366 = vmatprep.subr.mxu0 0.0
  %367 = vmatpush1.msra.mxu0 0.0
  %368 = vmatprep.subr.mxu0 0.0
  %369 = vmatpush1.msra.mxu0 0.0
  %370 = vmatprep.subr.mxu0 0.0
  %371 = vmatpush1.msra.mxu0 0.0
  %372 = vmatprep.subr.mxu0 0.0
  %373 = vmatpush1.msra.mxu0 0.0
  %374 = vmatprep.subr.mxu0 0.0
  %375 = vmatpush1.msra.mxu0 0.0
  %376 = vmatprep.subr.mxu0 0.0
  %377 = vmatpush1.msra.mxu0 0.0
  %378 = vmatprep.subr.mxu0 0.0
  %379 = vmatpush1.msra.mxu0 0.0
  %380 = vmatprep.subr.mxu0 0.0
  %381 = vmatpush1.msra.mxu0 0.0
  %382 = vmatprep.subr.mxu0 0.0
  %383 = vmatpush1.msra.mxu0 0.0
  %384 = vmatprep.subr.mxu0 0.0
  %385 = vmatpush1.msra.mxu0 0.0
  %386 = vmatprep.subr.mxu0 0.0
  %387 = vmatpush1.msra.mxu0 0.0
  %388 = vmatprep.subr.mxu0 0.0
  %389 = vmatpush1.msra.mxu0 0.0
  %390 = vmatprep.subr.mxu0 0.0
  %391 = vmatpush1.msra.mxu0 0.0
  %392 = vmatprep.subr.mxu0 0.0
  %393 = vmatpush1.msra.mxu0 0.0
  %394 = vmatprep.subr.mxu0 0.0
  %395 = vmatpush1.msra.mxu0 0.0
  %396 = vmatprep.subr.mxu0 0.0
  %397 = vmatpush1.msra.mxu0 0.0
  %398 = vmatprep.subr.mxu0 0.0
  %399 = vmatpush1.msra.mxu0 0.0
  %400 = vmatprep.subr.mxu0 0.0
  %401 = vmatpush1.msra.mxu0 0.0
  %402 = vmatprep.subr.mxu0 0.0
  %403 = vmatpush1.msra.mxu0 0.0
  %404 = vmatprep.subr.mxu0 0.0
  %405 = vmatpush1.msra.mxu0 0.0
  %406 = vmatprep.subr.mxu0 0.0
  %407 = vmatpush1.msra.mxu0 0.0
  %408 = vmatprep.subr.mxu0 0.0
  %409 = vmatpush1.msra.mxu0 0.0
  %410 = vmatprep.subr.mxu0 0.0
  %411 = vmatpush1.msra.mxu0 0.0
  %412 = vmatprep.subr.mxu0 0.0
  %413 = vmatpush1.msra.mxu0 0.0
  %414 = vmatprep.mubr.f32.mxu0 0.0
  %415 = vmatmul.mubr.f32.gmra.mrb[0].mxu0 %v348
  %v416 = vpop.f32.mrb[0].mxu0
  %v417 = vadd.f32 %v346, %v416
  %v418 = vpop.f32.mrb[0].mxu0
  %419 = vdwg.mxu0
  %v420 = vmax.f32 %v417, 0.0
  %v421 = vld [vmem:[%s7 + $0x3] sm:$0x1]
  %v422 = vlaneseq
  %v423 = vshrl.u32 %v422, 7
  %v424 = vsub.s32 0, %v423
  %v425 = vrot.slane %v421, %v424
  %v426 = vmul.f32 %v420, %v425
  %vm427 = vcmask 254976
  %v428 = vsel %vm427, %v426, 0.0
  %429 = vadd.xlane.f32.xlu0 %v428
  %v430 = vpop.xlane.xlu0 %429
  %v431 = vadd.f32 %v430, %v57
  %433 = vrot.lane.b32.xlu0 %v431, 127
  %v434 = vpop.permute.xlu0 %433
  %vm436 = vcmask 1024
  %437 = vst.msk [vmem:[%s9] sm:$0x3] %vm436, %v434
  // Predicated region
  $region38: #{base_gnn_forward.1} parent=0 // pred_check
    _
  $region39: #{base_gnn_forward.1} parent=0 // pred_check_branch
    %439 = sbr.rel (0) target = $region41
  $region40: #{base_gnn_forward.1} parent=0 // pred_region
    _
  $region41: #{base_gnn_forward.1} parent=0 // pred_fallthru
    _
  // Predicated region
  $region42: #{base_gnn_forward.1} parent=0 // pred_check
    _
  $region43: #{base_gnn_forward.1} parent=0 // pred_check_branch
    %441 = sbr.rel (0) target = $region45
  $region44: #{base_gnn_forward.1} parent=0 // pred_region
    _
  $region45: #{base_gnn_forward.1} parent=0 // pred_fallthru
    _
  // Predicated region
  $region46: #{base_gnn_forward.1} parent=0 // pred_check
    _
  $region47: #{base_gnn_forward.1} parent=0 // pred_check_branch
    %443 = sbr.rel (0) target = $region49
  $region48: #{base_gnn_forward.1} parent=0 // pred_region
    _
  $region49: #{base_gnn_forward.1} parent=0 // pred_fallthru
    _
  // Predicated region
  $region50: #{base_gnn_forward.1} parent=0 // pred_check
    _
  $region51: #{base_gnn_forward.1} parent=0 // pred_check_branch
    %445 = sbr.rel (0) target = $region53
  $region52: #{base_gnn_forward.1} parent=0 // pred_region
    _
  $region53: #{base_gnn_forward.1} parent=0 // pred_fallthru
    _

</llo_original>
